<compile_context>
chip_gen: v6e
topology: v6e:2x2x1
jax: 0.10.0
libtpu: 0.0.40
codegen_flags: <defaults>
</compile_context>

<pallas_src>
import jax
import jax.numpy as jnp
from jax.experimental import pallas as pl
from jax.experimental.pallas import tpu as pltpu

EPS = 1e-5          # BatchNorm1d default eps (training-mode batch statistics)
OUT_LANES = 128     # lane padding for the folded output (lane-dense store)


def _linear_bn_relu(h_in, w, g, be, inv_b):
    """Linear (bf16 MXU operands, f32 accum, bias dropped: it cancels under
    batch-stat BN) -> BatchNorm1d (one-pass batch stats, folded scale/shift)
    -> ReLU."""
    h = jnp.dot(h_in.astype(w.dtype), w, preferred_element_type=jnp.float32)
    mu = jnp.sum(h, axis=0, keepdims=True) * inv_b                  # E[h]
    s2 = jnp.sum(h * h, axis=0, keepdims=True) * inv_b              # E[h^2]
    var = jnp.maximum(s2 - mu * mu, 0.0)                            # cancellation guard
    scale = g * jax.lax.rsqrt(var + EPS)                            # (1, H)
    shift = be - mu * scale                                         # (1, H)
    return jnp.maximum(h * scale + shift, 0.0)


def obj_model_kernel(x_ref,
                     w1, g1, be1,
                     w2_hbm, g2, be2,
                     w3_hbm, g3, be3,
                     w4_hbm, b4,
                     o_ref,
                     w2_buf, w3_buf, w4_buf, sem):
    # Kick off w2/w3/w4 fetches immediately; they overlap layer-1/2/3 compute.
    cp2 = pltpu.make_async_copy(w2_hbm, w2_buf, sem.at[0]); cp2.start()
    cp3 = pltpu.make_async_copy(w3_hbm, w3_buf, sem.at[1]); cp3.start()
    cp4 = pltpu.make_async_copy(w4_hbm, w4_buf, sem.at[2]); cp4.start()

    inv_b = 1.0 / x_ref.shape[0]                     # static batch size

    h = _linear_bn_relu(x_ref[...], w1[...], g1[...], be1[...], inv_b)
    cp2.wait()
    h = _linear_bn_relu(h, w2_buf[...], g2[...], be2[...], inv_b)
    cp3.wait()
    h = _linear_bn_relu(h, w3_buf[...], g3[...], be3[...], inv_b)
    cp4.wait()
    # Folded last layer: Linear(256,8) + mean(dim=1) == h @ (w4 @ 1/8) + mean(b4),
    # zero-padded to 128 lanes -> lane-dense (B, 128) store; column 0 is the result.
    w = w4_buf[...]
    o_ref[...] = (jnp.dot(h.astype(w.dtype), w,
                          preferred_element_type=jnp.float32) + b4[...])


def pack_params(params):
    """One-time repack of module-faithful f32 params into kernel-ready operands.

    Hidden-layer biases b1/b2/b3 are dropped (exact cancellation under batch-stat
    BN); last layer is folded with the mean and lane-padded; weights cast to bf16.
    """
    (w1, _b1, g1, be1, w2, _b2, g2, be2, w3, _b3, g3, be3, w4, b4) = params
    out8 = w4.shape[1]
    w4_eff = w4 @ (jnp.ones((out8, 1), jnp.float32) / out8)          # (256, 1)
    b4_eff = jnp.mean(b4, axis=1, keepdims=True)                     # (1, 1)
    w4_pad = jnp.zeros((w4.shape[0], OUT_LANES), jnp.float32).at[:, :1].set(w4_eff)
    b4_pad = jnp.zeros((1, OUT_LANES), jnp.float32).at[:, :1].set(b4_eff)
    bf16 = lambda w: w.astype(jnp.bfloat16)
    return (bf16(w1), g1, be1,
            bf16(w2), g2, be2,
            bf16(w3), g3, be3,
            bf16(w4_pad), b4_pad)


@jax.jit
def obj_model_forward(x, packed):
    """x: (B, inp_dim) f32; packed: output of pack_params.

    Returns the lane-padded (B, 128) f32 output; column 0 holds the module's
    (B, 1) result (kept padded to avoid an extra dispatched slice op).
    """
    B = x.shape[0]
    w2, w3, w4 = packed[3], packed[6], packed[9]
    vmem = pl.BlockSpec(memory_space=pltpu.MemorySpace.VMEM)
    hbm = pl.BlockSpec(memory_space=pl.ANY)          # manual DMA inside the kernel
    in_specs = [vmem,                 # x
                vmem, vmem, vmem,     # w1, g1, be1
                hbm, vmem, vmem,      # w2 (async DMA), g2, be2
                hbm, vmem, vmem,      # w3 (async DMA), g3, be3
                hbm, vmem]            # w4 (async DMA), b4
    return pl.pallas_call(
        obj_model_kernel,
        out_shape=jax.ShapeDtypeStruct((B, OUT_LANES), jnp.float32),
        in_specs=in_specs,
        out_specs=vmem,
        scratch_shapes=[
            pltpu.VMEM(w2.shape, w2.dtype),
            pltpu.VMEM(w3.shape, w3.dtype),
            pltpu.VMEM(w4.shape, w4.dtype),
            pltpu.SemaphoreType.DMA((3,)),
        ],
    )(x, *packed)


def init_params(key, inp_dim, dims=(256, 256, 256), out_dim_last=8):
    """Module-faithful f32 params. Weights stored (in, out); bias/BN params (1, out).

    Hidden Linear: uniform(-1/sqrt(fan_in), 1/sqrt(fan_in)); last layer: orthogonal
    columns scaled by 0.1, bias = 1e-6 (mirrors layer_init_with_orthogonal).
    """
    sizes = [inp_dim, *dims, out_dim_last]
    params = []
    keys = jax.random.split(key, len(sizes) - 1)
    for i in range(len(sizes) - 1):
        fan_in, fan_out = sizes[i], sizes[i + 1]
        kw, kb = jax.random.split(keys[i])
        if i == len(sizes) - 2:
            a = jax.random.normal(kw, (fan_in, fan_out), jnp.float32)
            q, _ = jnp.linalg.qr(a)
            params.extend([0.1 * q[:, :fan_out],
                           jnp.full((1, fan_out), 1e-6, jnp.float32)])
        else:
            bound = 1.0 / jnp.sqrt(float(fan_in))
            w = jax.random.uniform(kw, (fan_in, fan_out), jnp.float32, -bound, bound)
            b = jax.random.uniform(kb, (1, fan_out), jnp.float32, -bound, bound)
            params.extend([w, b,
                           jnp.ones((1, fan_out), jnp.float32),    # BN gamma
                           jnp.zeros((1, fan_out), jnp.float32)])  # BN beta
    return tuple(params)


def reference_forward(x, params):
    """Pure-JAX reference mirroring the PyTorch module structure (hidden biases
    kept, two-pass BN batch stats, unfused last Linear + mean), with the same
    bf16 matmul-operand quantization the kernel applies."""
    (w1, b1, g1, be1, w2, b2, g2, be2, w3, b3, g3, be3, w4, b4) = params

    def lin(h, w, b):
        return jnp.dot(h.astype(jnp.bfloat16), w.astype(jnp.bfloat16),
                       preferred_element_type=jnp.float32) + b

    def bn_relu(h, g, be):
        mu = jnp.mean(h, axis=0, keepdims=True)
        var = jnp.mean((h - mu) ** 2, axis=0, keepdims=True)
        return jnp.maximum(g * (h - mu) * jax.lax.rsqrt(var + EPS) + be, 0.0)

    h = bn_relu(lin(x, w1, b1), g1, be1)
    h = bn_relu(lin(h, w2, b2), g2, be2)
    h = bn_relu(lin(h, w3, b3), g3, be3)
    y = lin(h, w4, b4)                               # (B, 8)
    return jnp.mean(y, axis=1, keepdims=True)        # (B, 1)


if __name__ == "__main__":
    B, INP_DIM = 8, 32
    key = jax.random.PRNGKey(0)
    kx, kp = jax.random.split(key)

    x = jax.random.normal(kx, (B, INP_DIM), jnp.float32)
    params = init_params(kp, INP_DIM, dims=(256, 256, 256), out_dim_last=8)
    packed = pack_params(params)                     # drop biases + fold + bf16, done once

    out_padded = jax.block_until_ready(obj_model_forward(x, packed))
    out = out_padded[:, :1]                          # column 0 holds the result
    ref = reference_forward(x, params)

    assert out_padded.shape == (B, OUT_LANES), out_padded.shape
    assert out.shape == (B, 1), out.shape
    assert bool(jnp.all(jnp.isfinite(out)))
    assert jnp.allclose(out, ref, atol=2e-3, rtol=2e-2), (out, ref)

    print("KERNEL_OK")
</pallas_src>

<mosaic_0001>
module attributes {stable_mosaic.version = 11 : i64} {
  func.func @obj_model_kernel(%arg0: memref<8x32xf32, #tpu.memory_space<vmem>>, %arg1: memref<32x256xbf16, #tpu.memory_space<vmem>>, %arg2: memref<1x256xf32, #tpu.memory_space<vmem>>, %arg3: memref<1x256xf32, #tpu.memory_space<vmem>>, %arg4: memref<256x256xbf16, #tpu.memory_space<any>>, %arg5: memref<1x256xf32, #tpu.memory_space<vmem>>, %arg6: memref<1x256xf32, #tpu.memory_space<vmem>>, %arg7: memref<256x256xbf16, #tpu.memory_space<any>>, %arg8: memref<1x256xf32, #tpu.memory_space<vmem>>, %arg9: memref<1x256xf32, #tpu.memory_space<vmem>>, %arg10: memref<256x128xbf16, #tpu.memory_space<any>>, %arg11: memref<1x128xf32, #tpu.memory_space<vmem>>, %arg12: memref<8x128xf32, #tpu.memory_space<vmem>>, %arg13: memref<256x256xbf16, #tpu.memory_space<vmem>>, %arg14: memref<256x256xbf16, #tpu.memory_space<vmem>>, %arg15: memref<256x128xbf16, #tpu.memory_space<vmem>>, %arg16: memref<3x!tpu.dma_semaphore, #tpu.memory_space<semaphore_mem>>) attributes {dimension_semantics = [], scalar_prefetch = 0 : i64, scratch_operands = 4 : i64, tpu.core_type = #tpu.core_type<tc>} {
    %c0_i32 = arith.constant 0 : i32
    %0 = tpu.memref_slice %arg16[%c0_i32] : memref<3x!tpu.dma_semaphore, #tpu.memory_space<semaphore_mem>> -> memref<1x!tpu.dma_semaphore, #tpu.memory_space<semaphore_mem>>
    %1 = tpu.memref_squeeze %0 : memref<1x!tpu.dma_semaphore, #tpu.memory_space<semaphore_mem>> -> memref<!tpu.dma_semaphore, #tpu.memory_space<semaphore_mem>>
    tpu.enqueue_dma source(%arg4 : memref<256x256xbf16, #tpu.memory_space<any>>) target(%arg13 : memref<256x256xbf16, #tpu.memory_space<vmem>>) target_semaphore(%1 : memref<!tpu.dma_semaphore, #tpu.memory_space<semaphore_mem>>)
    %c1_i32 = arith.constant 1 : i32
    %2 = tpu.memref_slice %arg16[%c1_i32] : memref<3x!tpu.dma_semaphore, #tpu.memory_space<semaphore_mem>> -> memref<1x!tpu.dma_semaphore, #tpu.memory_space<semaphore_mem>>
    %3 = tpu.memref_squeeze %2 : memref<1x!tpu.dma_semaphore, #tpu.memory_space<semaphore_mem>> -> memref<!tpu.dma_semaphore, #tpu.memory_space<semaphore_mem>>
    tpu.enqueue_dma source(%arg7 : memref<256x256xbf16, #tpu.memory_space<any>>) target(%arg14 : memref<256x256xbf16, #tpu.memory_space<vmem>>) target_semaphore(%3 : memref<!tpu.dma_semaphore, #tpu.memory_space<semaphore_mem>>)
    %c2_i32 = arith.constant 2 : i32
    %4 = tpu.memref_slice %arg16[%c2_i32] : memref<3x!tpu.dma_semaphore, #tpu.memory_space<semaphore_mem>> -> memref<1x!tpu.dma_semaphore, #tpu.memory_space<semaphore_mem>>
    %5 = tpu.memref_squeeze %4 : memref<1x!tpu.dma_semaphore, #tpu.memory_space<semaphore_mem>> -> memref<!tpu.dma_semaphore, #tpu.memory_space<semaphore_mem>>
    tpu.enqueue_dma source(%arg10 : memref<256x128xbf16, #tpu.memory_space<any>>) target(%arg15 : memref<256x128xbf16, #tpu.memory_space<vmem>>) target_semaphore(%5 : memref<!tpu.dma_semaphore, #tpu.memory_space<semaphore_mem>>)
    %c0 = arith.constant 0 : index
    %c0_0 = arith.constant 0 : index
    %6 = vector.load %arg0[%c0, %c0_0] : memref<8x32xf32, #tpu.memory_space<vmem>>, vector<8x32xf32>
    %c0_1 = arith.constant 0 : index
    %c0_2 = arith.constant 0 : index
    %7 = vector.load %arg1[%c0_1, %c0_2] : memref<32x256xbf16, #tpu.memory_space<vmem>>, vector<32x256xbf16>
    %c0_3 = arith.constant 0 : index
    %c0_4 = arith.constant 0 : index
    %8 = vector.load %arg2[%c0_3, %c0_4] : memref<1x256xf32, #tpu.memory_space<vmem>>, vector<1x256xf32>
    %c0_5 = arith.constant 0 : index
    %c0_6 = arith.constant 0 : index
    %9 = vector.load %arg3[%c0_5, %c0_6] : memref<1x256xf32, #tpu.memory_space<vmem>>, vector<1x256xf32>
    %10 = arith.truncf %6 : vector<8x32xf32> to vector<8x32xbf16>
    %cst = arith.constant dense<0.000000e+00> : vector<8x256xf32>
    %11 = tpu.matmul %10, %7, %cst {dimension_numbers = #tpu.dot_dimension_numbers<[1], [0], [0], [1], [0, 0, 1, 1], [], []>} : vector<8x32xbf16>, vector<32x256xbf16>, vector<8x256xf32> -> vector<8x256xf32>
    %cst_7 = arith.constant dense<0.000000e+00> : vector<256xf32>
    %12 = vector.multi_reduction <add>, %11, %cst_7 [0] : vector<8x256xf32> to vector<256xf32>
    %13 = vector.shape_cast %12 : vector<256xf32> to vector<1x256xf32>
    %cst_8 = arith.constant 1.250000e-01 : f32
    %14 = vector.broadcast %cst_8 : f32 to vector<1x256xf32>
    %15 = arith.mulf %13, %14 : vector<1x256xf32>
    %16 = arith.mulf %11, %11 : vector<8x256xf32>
    %cst_9 = arith.constant dense<0.000000e+00> : vector<256xf32>
    %17 = vector.multi_reduction <add>, %16, %cst_9 [0] : vector<8x256xf32> to vector<256xf32>
    %18 = vector.shape_cast %17 : vector<256xf32> to vector<1x256xf32>
    %cst_10 = arith.constant 1.250000e-01 : f32
    %19 = vector.broadcast %cst_10 : f32 to vector<1x256xf32>
    %20 = arith.mulf %18, %19 : vector<1x256xf32>
    %21 = arith.mulf %15, %15 : vector<1x256xf32>
    %22 = arith.subf %20, %21 : vector<1x256xf32>
    %cst_11 = arith.constant 0.000000e+00 : f32
    %23 = vector.broadcast %cst_11 : f32 to vector<1x256xf32>
    %24 = arith.maximumf %22, %23 : vector<1x256xf32>
    %cst_12 = arith.constant 9.99999974E-6 : f32
    %25 = vector.broadcast %cst_12 : f32 to vector<1x256xf32>
    %26 = arith.addf %24, %25 : vector<1x256xf32>
    %27 = math.rsqrt %26 : vector<1x256xf32>
    %28 = arith.mulf %8, %27 : vector<1x256xf32>
    %29 = arith.mulf %15, %28 : vector<1x256xf32>
    %30 = arith.subf %9, %29 : vector<1x256xf32>
    %31 = vector.broadcast %28 : vector<1x256xf32> to vector<8x256xf32>
    %32 = arith.mulf %11, %31 : vector<8x256xf32>
    %33 = vector.broadcast %30 : vector<1x256xf32> to vector<8x256xf32>
    %34 = arith.addf %32, %33 : vector<8x256xf32>
    %cst_13 = arith.constant 0.000000e+00 : f32
    %35 = vector.broadcast %cst_13 : f32 to vector<8x256xf32>
    %36 = arith.maximumf %34, %35 : vector<8x256xf32>
    %c0_i32_14 = arith.constant 0 : i32
    %37 = tpu.memref_slice %arg16[%c0_i32_14] : memref<3x!tpu.dma_semaphore, #tpu.memory_space<semaphore_mem>> -> memref<1x!tpu.dma_semaphore, #tpu.memory_space<semaphore_mem>>
    %38 = tpu.memref_squeeze %37 : memref<1x!tpu.dma_semaphore, #tpu.memory_space<semaphore_mem>> -> memref<!tpu.dma_semaphore, #tpu.memory_space<semaphore_mem>>
    tpu.wait_dma2 semaphore(%38 : memref<!tpu.dma_semaphore, #tpu.memory_space<semaphore_mem>>) src(%arg4 : memref<256x256xbf16, #tpu.memory_space<any>>) dst(%arg13 : memref<256x256xbf16, #tpu.memory_space<vmem>>)
    %c0_15 = arith.constant 0 : index
    %c0_16 = arith.constant 0 : index
    %39 = vector.load %arg13[%c0_15, %c0_16] : memref<256x256xbf16, #tpu.memory_space<vmem>>, vector<256x256xbf16>
    %c0_17 = arith.constant 0 : index
    %c0_18 = arith.constant 0 : index
    %40 = vector.load %arg5[%c0_17, %c0_18] : memref<1x256xf32, #tpu.memory_space<vmem>>, vector<1x256xf32>
    %c0_19 = arith.constant 0 : index
    %c0_20 = arith.constant 0 : index
    %41 = vector.load %arg6[%c0_19, %c0_20] : memref<1x256xf32, #tpu.memory_space<vmem>>, vector<1x256xf32>
    %42 = arith.truncf %36 : vector<8x256xf32> to vector<8x256xbf16>
    %cst_21 = arith.constant dense<0.000000e+00> : vector<8x256xf32>
    %43 = tpu.matmul %42, %39, %cst_21 {dimension_numbers = #tpu.dot_dimension_numbers<[1], [0], [0], [1], [0, 0, 1, 1], [], []>} : vector<8x256xbf16>, vector<256x256xbf16>, vector<8x256xf32> -> vector<8x256xf32>
    %cst_22 = arith.constant dense<0.000000e+00> : vector<256xf32>
    %44 = vector.multi_reduction <add>, %43, %cst_22 [0] : vector<8x256xf32> to vector<256xf32>
    %45 = vector.shape_cast %44 : vector<256xf32> to vector<1x256xf32>
    %cst_23 = arith.constant 1.250000e-01 : f32
    %46 = vector.broadcast %cst_23 : f32 to vector<1x256xf32>
    %47 = arith.mulf %45, %46 : vector<1x256xf32>
    %48 = arith.mulf %43, %43 : vector<8x256xf32>
    %cst_24 = arith.constant dense<0.000000e+00> : vector<256xf32>
    %49 = vector.multi_reduction <add>, %48, %cst_24 [0] : vector<8x256xf32> to vector<256xf32>
    %50 = vector.shape_cast %49 : vector<256xf32> to vector<1x256xf32>
    %cst_25 = arith.constant 1.250000e-01 : f32
    %51 = vector.broadcast %cst_25 : f32 to vector<1x256xf32>
    %52 = arith.mulf %50, %51 : vector<1x256xf32>
    %53 = arith.mulf %47, %47 : vector<1x256xf32>
    %54 = arith.subf %52, %53 : vector<1x256xf32>
    %cst_26 = arith.constant 0.000000e+00 : f32
    %55 = vector.broadcast %cst_26 : f32 to vector<1x256xf32>
    %56 = arith.maximumf %54, %55 : vector<1x256xf32>
    %cst_27 = arith.constant 9.99999974E-6 : f32
    %57 = vector.broadcast %cst_27 : f32 to vector<1x256xf32>
    %58 = arith.addf %56, %57 : vector<1x256xf32>
    %59 = math.rsqrt %58 : vector<1x256xf32>
    %60 = arith.mulf %40, %59 : vector<1x256xf32>
    %61 = arith.mulf %47, %60 : vector<1x256xf32>
    %62 = arith.subf %41, %61 : vector<1x256xf32>
    %63 = vector.broadcast %60 : vector<1x256xf32> to vector<8x256xf32>
    %64 = arith.mulf %43, %63 : vector<8x256xf32>
    %65 = vector.broadcast %62 : vector<1x256xf32> to vector<8x256xf32>
    %66 = arith.addf %64, %65 : vector<8x256xf32>
    %cst_28 = arith.constant 0.000000e+00 : f32
    %67 = vector.broadcast %cst_28 : f32 to vector<8x256xf32>
    %68 = arith.maximumf %66, %67 : vector<8x256xf32>
    %c1_i32_29 = arith.constant 1 : i32
    %69 = tpu.memref_slice %arg16[%c1_i32_29] : memref<3x!tpu.dma_semaphore, #tpu.memory_space<semaphore_mem>> -> memref<1x!tpu.dma_semaphore, #tpu.memory_space<semaphore_mem>>
    %70 = tpu.memref_squeeze %69 : memref<1x!tpu.dma_semaphore, #tpu.memory_space<semaphore_mem>> -> memref<!tpu.dma_semaphore, #tpu.memory_space<semaphore_mem>>
    tpu.wait_dma2 semaphore(%70 : memref<!tpu.dma_semaphore, #tpu.memory_space<semaphore_mem>>) src(%arg7 : memref<256x256xbf16, #tpu.memory_space<any>>) dst(%arg14 : memref<256x256xbf16, #tpu.memory_space<vmem>>)
    %c0_30 = arith.constant 0 : index
    %c0_31 = arith.constant 0 : index
    %71 = vector.load %arg14[%c0_30, %c0_31] : memref<256x256xbf16, #tpu.memory_space<vmem>>, vector<256x256xbf16>
    %c0_32 = arith.constant 0 : index
    %c0_33 = arith.constant 0 : index
    %72 = vector.load %arg8[%c0_32, %c0_33] : memref<1x256xf32, #tpu.memory_space<vmem>>, vector<1x256xf32>
    %c0_34 = arith.constant 0 : index
    %c0_35 = arith.constant 0 : index
    %73 = vector.load %arg9[%c0_34, %c0_35] : memref<1x256xf32, #tpu.memory_space<vmem>>, vector<1x256xf32>
    %74 = arith.truncf %68 : vector<8x256xf32> to vector<8x256xbf16>
    %cst_36 = arith.constant dense<0.000000e+00> : vector<8x256xf32>
    %75 = tpu.matmul %74, %71, %cst_36 {dimension_numbers = #tpu.dot_dimension_numbers<[1], [0], [0], [1], [0, 0, 1, 1], [], []>} : vector<8x256xbf16>, vector<256x256xbf16>, vector<8x256xf32> -> vector<8x256xf32>
    %cst_37 = arith.constant dense<0.000000e+00> : vector<256xf32>
    %76 = vector.multi_reduction <add>, %75, %cst_37 [0] : vector<8x256xf32> to vector<256xf32>
    %77 = vector.shape_cast %76 : vector<256xf32> to vector<1x256xf32>
    %cst_38 = arith.constant 1.250000e-01 : f32
    %78 = vector.broadcast %cst_38 : f32 to vector<1x256xf32>
    %79 = arith.mulf %77, %78 : vector<1x256xf32>
    %80 = arith.mulf %75, %75 : vector<8x256xf32>
    %cst_39 = arith.constant dense<0.000000e+00> : vector<256xf32>
    %81 = vector.multi_reduction <add>, %80, %cst_39 [0] : vector<8x256xf32> to vector<256xf32>
    %82 = vector.shape_cast %81 : vector<256xf32> to vector<1x256xf32>
    %cst_40 = arith.constant 1.250000e-01 : f32
    %83 = vector.broadcast %cst_40 : f32 to vector<1x256xf32>
    %84 = arith.mulf %82, %83 : vector<1x256xf32>
    %85 = arith.mulf %79, %79 : vector<1x256xf32>
    %86 = arith.subf %84, %85 : vector<1x256xf32>
    %cst_41 = arith.constant 0.000000e+00 : f32
    %87 = vector.broadcast %cst_41 : f32 to vector<1x256xf32>
    %88 = arith.maximumf %86, %87 : vector<1x256xf32>
    %cst_42 = arith.constant 9.99999974E-6 : f32
    %89 = vector.broadcast %cst_42 : f32 to vector<1x256xf32>
    %90 = arith.addf %88, %89 : vector<1x256xf32>
    %91 = math.rsqrt %90 : vector<1x256xf32>
    %92 = arith.mulf %72, %91 : vector<1x256xf32>
    %93 = arith.mulf %79, %92 : vector<1x256xf32>
    %94 = arith.subf %73, %93 : vector<1x256xf32>
    %95 = vector.broadcast %92 : vector<1x256xf32> to vector<8x256xf32>
    %96 = arith.mulf %75, %95 : vector<8x256xf32>
    %97 = vector.broadcast %94 : vector<1x256xf32> to vector<8x256xf32>
    %98 = arith.addf %96, %97 : vector<8x256xf32>
    %cst_43 = arith.constant 0.000000e+00 : f32
    %99 = vector.broadcast %cst_43 : f32 to vector<8x256xf32>
    %100 = arith.maximumf %98, %99 : vector<8x256xf32>
    %c2_i32_44 = arith.constant 2 : i32
    %101 = tpu.memref_slice %arg16[%c2_i32_44] : memref<3x!tpu.dma_semaphore, #tpu.memory_space<semaphore_mem>> -> memref<1x!tpu.dma_semaphore, #tpu.memory_space<semaphore_mem>>
    %102 = tpu.memref_squeeze %101 : memref<1x!tpu.dma_semaphore, #tpu.memory_space<semaphore_mem>> -> memref<!tpu.dma_semaphore, #tpu.memory_space<semaphore_mem>>
    tpu.wait_dma2 semaphore(%102 : memref<!tpu.dma_semaphore, #tpu.memory_space<semaphore_mem>>) src(%arg10 : memref<256x128xbf16, #tpu.memory_space<any>>) dst(%arg15 : memref<256x128xbf16, #tpu.memory_space<vmem>>)
    %c0_45 = arith.constant 0 : index
    %c0_46 = arith.constant 0 : index
    %103 = vector.load %arg15[%c0_45, %c0_46] : memref<256x128xbf16, #tpu.memory_space<vmem>>, vector<256x128xbf16>
    %104 = arith.truncf %100 : vector<8x256xf32> to vector<8x256xbf16>
    %cst_47 = arith.constant dense<0.000000e+00> : vector<8x128xf32>
    %105 = tpu.matmul %104, %103, %cst_47 {dimension_numbers = #tpu.dot_dimension_numbers<[1], [0], [0], [1], [0, 0, 1, 1], [], []>} : vector<8x256xbf16>, vector<256x128xbf16>, vector<8x128xf32> -> vector<8x128xf32>
    %c0_48 = arith.constant 0 : index
    %c0_49 = arith.constant 0 : index
    %106 = vector.load %arg11[%c0_48, %c0_49] : memref<1x128xf32, #tpu.memory_space<vmem>>, vector<1x128xf32>
    %107 = vector.broadcast %106 : vector<1x128xf32> to vector<8x128xf32>
    %108 = arith.addf %105, %107 : vector<8x128xf32>
    %c0_50 = arith.constant 0 : index
    %c0_51 = arith.constant 0 : index
    %109 = vector.load %arg12[%c0_50, %c0_51] : memref<8x128xf32, #tpu.memory_space<vmem>>, vector<8x128xf32>
    tpu.vector_store %arg12[%c0_50, %c0_51], %108 {strides = array<i32>} : memref<8x128xf32, #tpu.memory_space<vmem>>, vector<8x128xf32>,
    return
  }
}

</mosaic_0001>

<llo_original>
// kernel: obj_model_forward.1
$region0: #{obj_model_forward.1}
  #allocation0 [shape = 'u32[]', space=smem, size = 0x4, offset = 0x4, fixed_abs, tag = 'smem constant byte address 0x4 - core index']
  #allocation1 [shape = 'u32[144,128]{1,0:T(1,128)}', space=vmem, size = 0x12000, scoped, tag = 'internal scratch']
  #allocation2 [shape = 'bf16[256,256]{1,0:T(8,128)(2,1)}', space=vmem, size = 0x20000, scoped, tag = 'scratch operand']
  #allocation3 [shape = 'bf16[256,256]{1,0:T(8,128)(2,1)}', space=vmem, size = 0x20000, scoped, tag = 'scratch operand']
  #allocation4 [shape = 'bf16[256,128]{1,0:T(8,128)(2,1)}', space=vmem, size = 0x10000, scoped, tag = 'scratch operand']
  #allocation5 [shape = 's32[3]{0}', space=sflag, size = 0xc, scoped, tag = 'scratch operand']
  #allocation12 [shape = 's32[]', space=sflag, size = 0x4, offset = 0, fixed_abs, tag = 'sflag constant byte address 0x0 - dummy sync flag']
  #allocation13 [shape = 's32[]', space=sflag, size = 0x4, offset = 0, fixed_abs, tag = 'sflag constant byte address 0x0 - dummy sync flag']
  #allocation14 [shape = 'u32[]', space=smem, size = 0x4, offset = 0x44, fixed_abs, tag = 'smem constant byte address 0x44 - assertion arg 0']
  #allocation15 [shape = 'u32[]', space=smem, size = 0x4, offset = 0x48, fixed_abs, tag = 'smem constant byte address 0x48 - assertion arg 1']
  #allocation16 [shape = 's32[]', space=sflag, size = 0x4, offset = 0, fixed_abs, tag = 'sflag constant byte address 0x0 - dummy sync flag']
  #allocation17 [shape = 's32[]', space=sflag, size = 0x4, offset = 0, fixed_abs, tag = 'sflag constant byte address 0x0 - dummy sync flag']
  #allocation18 [shape = 's32[]', space=sflag, size = 0x4, offset = 0, fixed_abs, tag = 'sflag constant byte address 0x0 - dummy sync flag']
  #allocation19 [shape = 's32[]', space=sflag, size = 0x4, offset = 0, fixed_abs, tag = 'sflag constant byte address 0x0 - dummy sync flag']
  %s0 = inlined_call_operand.hbm [shape: f32[8,32], index: 0, kind: input, shape index: {}]
  %s1 = inlined_call_operand.hbm [shape: bf16[32,256], index: 1, kind: input, shape index: {}]
  %s2 = inlined_call_operand.vmem [shape: f32[1,256], index: 2, kind: input, shape index: {}]
  %s3 = inlined_call_operand.vmem [shape: f32[1,256], index: 3, kind: input, shape index: {}]
  %s4 = inlined_call_operand.hbm [shape: bf16[256,256], index: 4, kind: input, shape index: {}]
  %s5 = inlined_call_operand.vmem [shape: f32[1,256], index: 5, kind: input, shape index: {}]
  %s6 = inlined_call_operand.vmem [shape: f32[1,256], index: 6, kind: input, shape index: {}]
  %s7 = inlined_call_operand.hbm [shape: bf16[256,256], index: 7, kind: input, shape index: {}]
  %s8 = inlined_call_operand.vmem [shape: f32[1,256], index: 8, kind: input, shape index: {}]
  %s9 = inlined_call_operand.vmem [shape: f32[1,256], index: 9, kind: input, shape index: {}]
  %s10 = inlined_call_operand.hbm [shape: bf16[256,128], index: 10, kind: input, shape index: {}]
  %s11 = inlined_call_operand.vmem [shape: f32[1,128], index: 11, kind: input, shape index: {}]
  %s12 = inlined_call_operand.hbm [shape: f32[8,128], index: 12, kind: output, shape index: {}]
  %s13 = sld [smem:[#allocation0]]
  $region66: #{obj_model_forward.1} parent=0
    _
  %s15 = ssub.s32 1, %s13
  %s16 = scalar_select 0, %s15, %s13
  $region1: #{obj_model_forward.1} parent=0
    #allocation6 [shape = 'u8[4096]{0}', space=vmem, size = 0x1000, scoped, tag = 'input window, operand 0, single buffered']
    #allocation7 [shape = 's32[1]{0}', space=sflag, size = 0x4, scoped, tag = 'scoped memory for obj_model_forward.1']
    #allocation8 [shape = 's32[1]{0}', space=sflag, size = 0x4, scoped, tag = 'scoped memory for obj_model_forward.1']
    #allocation9 [shape = 'u8[16384]{0}', space=vmem, size = 0x4000, scoped, tag = 'input window, operand 1, single buffered']
    #allocation10 [shape = 's32[1]{0}', space=sflag, size = 0x4, scoped, tag = 'scoped memory for obj_model_forward.1']
    #allocation11 [shape = 'u8[4096]{0}', space=vmem, size = 0x1000, scoped, tag = 'output window, operand 0, single buffered']
    %17 = vsyncpa [#allocation7], 0
    %18 = vsyncpa [#allocation10], 0
    %19 = vsyncpa [#allocation8], 0
    // Predicated region
    $region2: #{obj_model_forward.1} parent=1 // pred_check
      _
    $region3: #{obj_model_forward.1} parent=1 // pred_check_branch
      %21 = sbr.rel (0) target = $region5
    $region4: #{obj_model_forward.1} parent=1 // pred_region
      %s23 = ssub.s32 128, 128
      %24 = vsyncadd [#allocation7], %s23
      %s26 = sshll.u32 [#allocation6], 4
      %s27 = int_to_ptr.vmem [resolvable:$true] %s26
      %29 = dma.hbm_to_vmem [thread:$0]  %s0, 128, %s27, [#allocation7]
    $region5: #{obj_model_forward.1} parent=1 // pred_fallthru
      _
    // Predicated region
    $region6: #{obj_model_forward.1} parent=1 // pred_check
      _
    $region7: #{obj_model_forward.1} parent=1 // pred_check_branch
      %31 = sbr.rel (0) target = $region9
    $region8: #{obj_model_forward.1} parent=1 // pred_region
      %s33 = ssub.s32 512, 512
      %34 = vsyncadd [#allocation10], %s33
      %s35 = sshll.u32 [#allocation9], 4
      %s36 = int_to_ptr.vmem [resolvable:$true] %s35
      %41 = dma.hbm_to_vmem [thread:$0]  %s1, 512, %s36, [#allocation10], 128, 128, 8
    $region9: #{obj_model_forward.1} parent=1 // pred_fallthru
      _
    // Predicated region
    $region10: #{obj_model_forward.1} parent=1 // pred_check
      _
    $region11: #{obj_model_forward.1} parent=1 // pred_check_branch
      %43 = sbr.rel (0) target = $region13
    $region12: #{obj_model_forward.1} parent=1 // pred_region
      _
    $region13: #{obj_model_forward.1} parent=1 // pred_fallthru
      _
    // Predicated region
    $region14: #{obj_model_forward.1} parent=1 // pred_check
      _
    $region15: #{obj_model_forward.1} parent=1 // pred_check_branch
      %45 = sbr.rel (0) target = $region17
    $region16: #{obj_model_forward.1} parent=1 // pred_region
      _
    $region17: #{obj_model_forward.1} parent=1 // pred_fallthru
      _
    // Predicated region
    $region18: #{obj_model_forward.1} parent=1 // pred_check
      _
    $region19: #{obj_model_forward.1} parent=1 // pred_check_branch
      %47 = sbr.rel (0) target = $region21
    $region20: #{obj_model_forward.1} parent=1 // pred_region
      _
    $region21: #{obj_model_forward.1} parent=1 // pred_fallthru
      _
    // Predicated region
    $region22: #{obj_model_forward.1} parent=1 // pred_check
      _
    $region23: #{obj_model_forward.1} parent=1 // pred_check_branch
      %49 = sbr.rel (0) target = $region25
    $region24: #{obj_model_forward.1} parent=1 // pred_region
      _
    $region25: #{obj_model_forward.1} parent=1 // pred_fallthru
      _
    // Predicated region
    $region26: #{obj_model_forward.1} parent=1 // pred_check
      _
    $region27: #{obj_model_forward.1} parent=1 // pred_check_branch
      %51 = sbr.rel (0) target = $region29
    $region28: #{obj_model_forward.1} parent=1 // pred_region
      _
    $region29: #{obj_model_forward.1} parent=1 // pred_fallthru
      _
    // Predicated region
    $region30: #{obj_model_forward.1} parent=1 // pred_check
      _
    $region31: #{obj_model_forward.1} parent=1 // pred_check_branch
      %53 = sbr.rel (0) target = $region33
    $region32: #{obj_model_forward.1} parent=1 // pred_region
      _
    $region33: #{obj_model_forward.1} parent=1 // pred_fallthru
      _
    // Predicated region
    $region34: #{obj_model_forward.1} parent=1 // pred_check
      _
    $region35: #{obj_model_forward.1} parent=1 // pred_check_branch
      %55 = sbr.rel (0) target = $region37
    $region36: #{obj_model_forward.1} parent=1 // pred_region
      _
    $region37: #{obj_model_forward.1} parent=1 // pred_fallthru
      _
    // Predicated region
    $region38: #{obj_model_forward.1} parent=1 // pred_check
      _
    $region39: #{obj_model_forward.1} parent=1 // pred_check_branch
      %57 = sbr.rel (0) target = $region41
    $region40: #{obj_model_forward.1} parent=1 // pred_region
      %58 = dma.done [#allocation7], 128
    $region41: #{obj_model_forward.1} parent=1 // pred_fallthru
      _
    // Predicated region
    $region42: #{obj_model_forward.1} parent=1 // pred_check
      _
    $region43: #{obj_model_forward.1} parent=1 // pred_check_branch
      %60 = sbr.rel (0) target = $region45
    $region44: #{obj_model_forward.1} parent=1 // pred_region
      %61 = dma.done [#allocation10], 512
    $region45: #{obj_model_forward.1} parent=1 // pred_fallthru
      _
    // Predicated region
    $region46: #{obj_model_forward.1} parent=1 // pred_check
      _
    $region47: #{obj_model_forward.1} parent=1 // pred_check_branch
      %64 = sbr.rel target = $region49
    $region48: #{obj_model_forward.1} parent=1 // pred_region
      %65 = sst [smem:[#allocation14]] [#allocation13]
      %66 = sst [smem:[#allocation15]] [#allocation12]
    $region49: #{obj_model_forward.1} parent=1 // pred_fallthru
      _
    %68 = shalt.err (0)
    %s70 = sshll.u32 [#allocation2], 4
    %s71 = int_to_ptr.vmem [resolvable:$true] %s70
    %73 = dma.hbm_to_vmem [thread:$0]  %s4, 4096, %s71, [#allocation5]
    %s74 = scalar_lea.sflag [#allocation5], 1
    // Predicated region
    $region50: #{obj_model_forward.1} parent=1 // pred_check
      _
    $region51: #{obj_model_forward.1} parent=1 // pred_check_branch
      %76 = sbr.rel target = $region53
    $region52: #{obj_model_forward.1} parent=1 // pred_region
      %77 = sst [smem:[#allocation14]] [#allocation17]
      %78 = sst [smem:[#allocation15]] [#allocation16]
    $region53: #{obj_model_forward.1} parent=1 // pred_fallthru
      _
    %80 = shalt.err (0)
    %s82 = sshll.u32 [#allocation3], 4
    %s83 = int_to_ptr.vmem [resolvable:$true] %s82
    %85 = dma.hbm_to_vmem [thread:$0]  %s7, 4096, %s83, %s74
    %s86 = scalar_lea.sflag [#allocation5], 2
    // Predicated region
    $region54: #{obj_model_forward.1} parent=1 // pred_check
      _
    $region55: #{obj_model_forward.1} parent=1 // pred_check_branch
      %88 = sbr.rel target = $region57
    $region56: #{obj_model_forward.1} parent=1 // pred_region
      %89 = sst [smem:[#allocation14]] [#allocation19]
      %90 = sst [smem:[#allocation15]] [#allocation18]
    $region57: #{obj_model_forward.1} parent=1 // pred_fallthru
      _
    %92 = shalt.err (0)
    %s94 = sshll.u32 [#allocation4], 4
    %s95 = int_to_ptr.vmem [resolvable:$true] %s94
    %97 = dma.hbm_to_vmem [thread:$0]  %s10, 2048, %s95, %s86
    %v98 = vld [vmem:[#allocation6] sm:$0xff]
    %v99 = vld [vmem:[#allocation9] sm:$0xff]
    %v100 = vld [vmem:[#allocation9 + $0x8] sm:$0xff]
    %v101 = vld [vmem:[#allocation9 + $0x10] sm:$0xff]
    %v102 = vld [vmem:[#allocation9 + $0x18] sm:$0xff]
    %v103 = vld [vmem:[%s2] sm:$0x3]
    %v104 = vld [vmem:[%s3] sm:$0x3]
    %v105 = vpack.c.bf16 %v98, %v98
    %v110 = vunpack.c.l.b16 %v99
    %v111 = vunpack.c.h.b16 %v99
    %v112 = vunpack.c.l.b16 %v100
    %v113 = vunpack.c.h.b16 %v100
    %v114 = vunpack.c.l.b16 %v101
    %v115 = vunpack.c.h.b16 %v101
    %v116 = vunpack.c.l.b16 %v102
    %v117 = vunpack.c.h.b16 %v102
    %v118 = vpack.c.b16 %v112, %v110
    %v119 = vpack.c.b16 %v113, %v111
    %v120 = vpack.c.b16 %v116, %v114
    %v121 = vpack.c.b16 %v117, %v115
    %vm126 = vcmask 261120
    %v128 = vsel %vm126, %v105, 0
    %130 = vmatprep.subr.bf16.mxu0 0
    %131 = vmatpush1.bf16.msra.mxu0 0
    %132 = vmatprep.subr.bf16.mxu0 0
    %133 = vmatpush1.bf16.msra.mxu0 0
    %134 = vmatprep.subr.bf16.mxu0 0
    %135 = vmatpush1.bf16.msra.mxu0 0
    %136 = vmatprep.subr.bf16.mxu0 0
    %137 = vmatpush1.bf16.msra.mxu0 0
    %138 = vmatprep.subr.bf16.mxu0 0
    %139 = vmatpush1.bf16.msra.mxu0 0
    %140 = vmatprep.subr.bf16.mxu0 0
    %141 = vmatpush1.bf16.msra.mxu0 0
    %142 = vmatprep.subr.bf16.mxu0 %v121
    %143 = vmatpush1.bf16.msra.mxu0 %v120
    %144 = vmatprep.subr.bf16.mxu0 %v119
    %145 = vmatpush1.bf16.msra.mxu0 %v118
    %146 = vmatprep.subr.bf16.mxu0 0
    %147 = vmatpush2.bf16.msra.mxu0 0
    %148 = vmatprep.subr.bf16.mxu0 0
    %149 = vmatpush2.bf16.msra.mxu0 0
    %150 = vmatprep.subr.bf16.mxu0 0
    %151 = vmatpush2.bf16.msra.mxu0 0
    %152 = vmatprep.subr.bf16.mxu0 0
    %153 = vmatpush2.bf16.msra.mxu0 0
    %154 = vmatprep.subr.bf16.mxu0 0
    %155 = vmatpush2.bf16.msra.mxu0 0
    %156 = vmatprep.subr.bf16.mxu0 0
    %157 = vmatpush2.bf16.msra.mxu0 0
    %158 = vmatprep.subr.bf16.mxu0 0
    %159 = vmatpush2.bf16.msra.mxu0 0
    %160 = vmatprep.subr.bf16.mxu0 0
    %161 = vmatpush2.bf16.msra.mxu0 0
    %162 = vmatprep.mubr.bf16.mxu0 0
    %163 = vmatmul.mubr.bf16.gmra.mxu0 %v128
    %v164 = vpop.f32.mrf.mxu0
    %v165 = vadd.f32 0.0, %v164
    %v166 = vpop.f32.mrf.mxu0
    %v167 = vadd.f32 0.0, %v166
    %v168 = vpop.f32.mrf.mxu0
    %v169 = vpop.f32.mrf.mxu0
    %170 = vdwg.mxu0
    %v171 = vrot.slane %v165, 4
    %v172 = vadd.f32 %v165, %v171
    %v173 = vrot.slane %v172, 2
    %v174 = vadd.f32 %v172, %v173
    %v175 = vrot.slane %v174, 1
    %v176 = vadd.f32 %v174, %v175
    %v177 = vrot.slane %v167, 4
    %v178 = vadd.f32 %v167, %v177
    %v179 = vrot.slane %v178, 2
    %v180 = vadd.f32 %v178, %v179
    %v181 = vrot.slane %v180, 1
    %v182 = vadd.f32 %v180, %v181
    %v183 = vmul.f32 %v176, 0.125
    %v184 = vmul.f32 %v182, 0.125
    %v185 = vmul.f32 %v165, %v165
    %v186 = vmul.f32 %v167, %v167
    %v187 = vrot.slane %v185, 4
    %v188 = vadd.f32 %v185, %v187
    %v189 = vrot.slane %v188, 2
    %v190 = vadd.f32 %v188, %v189
    %v191 = vrot.slane %v190, 1
    %v192 = vadd.f32 %v190, %v191
    %v193 = vrot.slane %v186, 4
    %v194 = vadd.f32 %v186, %v193
    %v195 = vrot.slane %v194, 2
    %v196 = vadd.f32 %v194, %v195
    %v197 = vrot.slane %v196, 1
    %v198 = vadd.f32 %v196, %v197
    %v199 = vmul.f32 %v192, 0.125
    %v200 = vmul.f32 %v198, 0.125
    %v201 = vmul.f32 %v183, %v183
    %v202 = vmul.f32 %v184, %v184
    %v203 = vsub.f32 %v199, %v201
    %v204 = vsub.f32 %v200, %v202
    %v205 = vmax.f32 %v203, 0.0
    %v206 = vmax.f32 %v204, 0.0
    %v207 = vadd.f32 %v205, 1e-05
    %v208 = vadd.f32 %v206, 1e-05
    %v209 = vrsqrt.pop %v207
    %v210 = vrsqrt.pop %v208
    %v213 = vcombine.low %v209, %v210
    %v215 = vunpack.c.l.s4 1966171168
    %v216 = vunpack.c.0.s8 %v215
    %v217 = vlaneseq
    %v218 = vshrl.u32 %v217, 7
    %v219 = vsub.s32 %v216, %v218
    %v220 = vrot.slane %v213, %v219
    %v222 = vunpack.c.l.s4 1966171168
    %v223 = vunpack.c.0.s8 %v222
    %v224 = vlaneseq
    %v225 = vshrl.u32 %v224, 7
    %v226 = vsub.s32 %v223, %v225
    %v227 = vrot.slane %v220, %v226
    %v229 = vmul.f32 %v103, %v227
    %v231 = vlaneseq
    %v232 = vshrl.u32 %v231, 7
    %v233 = vsub.s32 0, %v232
    %v234 = vrot.slane %v229, %v233
    %v235 = vlaneseq
    %v236 = vshrl.u32 %v235, 7
    %v237 = vsub.s32 1, %v236
    %v238 = vrot.slane %v229, %v237
    %v241 = vmul.f32 %v183, %v234
    %v242 = vmul.f32 %v184, %v238
    %v245 = vcombine.low %v241, %v242
    %v247 = vunpack.c.l.s4 1966171168
    %v248 = vunpack.c.0.s8 %v247
    %v249 = vlaneseq
    %v250 = vshrl.u32 %v249, 7
    %v251 = vsub.s32 %v248, %v250
    %v252 = vrot.slane %v245, %v251
    %v254 = vunpack.c.l.s4 1966171168
    %v255 = vunpack.c.0.s8 %v254
    %v256 = vlaneseq
    %v257 = vshrl.u32 %v256, 7
    %v258 = vsub.s32 %v255, %v257
    %v259 = vrot.slane %v252, %v258
    %v261 = vsub.f32 %v104, %v259
    %v262 = vmul.f32 %v165, %v234
    %v263 = vmul.f32 %v167, %v238
    %v265 = vlaneseq
    %v266 = vshrl.u32 %v265, 7
    %v267 = vsub.s32 0, %v266
    %v268 = vrot.slane %v261, %v267
    %v269 = vlaneseq
    %v270 = vshrl.u32 %v269, 7
    %v271 = vsub.s32 1, %v270
    %v272 = vrot.slane %v261, %v271
    %v275 = vadd.f32 %v262, %v268
    %v276 = vadd.f32 %v263, %v272
    %v277 = vmax.f32 %v275, 0.0
    %v278 = vmax.f32 %v276, 0.0
    %s279 = smul.u32 4, 32
    %s280 = smul.u32 %s279, 2
    %s281 = sshll.u32 %s280, 4
    %282 = dma.done [#allocation5], %s281
    %v283 = vld [vmem:[#allocation2] sm:$0xff]
    %v284 = vld [vmem:[#allocation2 + $0x8] sm:$0xff]
    %v285 = vld [vmem:[#allocation2 + $0x10] sm:$0xff]
    %v286 = vld [vmem:[#allocation2 + $0x18] sm:$0xff]
    %v287 = vld [vmem:[#allocation2 + $0x20] sm:$0xff]
    %v288 = vld [vmem:[#allocation2 + $0x28] sm:$0xff]
    %v289 = vld [vmem:[#allocation2 + $0x30] sm:$0xff]
    %v290 = vld [vmem:[#allocation2 + $0x38] sm:$0xff]
    %v291 = vld [vmem:[#allocation2 + $0x40] sm:$0xff]
    %v292 = vld [vmem:[#allocation2 + $0x48] sm:$0xff]
    %v293 = vld [vmem:[#allocation2 + $0x50] sm:$0xff]
    %v294 = vld [vmem:[#allocation2 + $0x58] sm:$0xff]
    %v295 = vld [vmem:[#allocation2 + $0x60] sm:$0xff]
    %v296 = vld [vmem:[#allocation2 + $0x68] sm:$0xff]
    %v297 = vld [vmem:[#allocation2 + $0x70] sm:$0xff]
    %v298 = vld [vmem:[#allocation2 + $0x78] sm:$0xff]
    %v299 = vld [vmem:[#allocation2 + $0x80] sm:$0xff]
    %v300 = vld [vmem:[#allocation2 + $0x88] sm:$0xff]
    %v301 = vld [vmem:[#allocation2 + $0x90] sm:$0xff]
    %v302 = vld [vmem:[#allocation2 + $0x98] sm:$0xff]
    %v303 = vld [vmem:[#allocation2 + $0xa0] sm:$0xff]
    %v304 = vld [vmem:[#allocation2 + $0xa8] sm:$0xff]
    %v305 = vld [vmem:[#allocation2 + $0xb0] sm:$0xff]
    %v306 = vld [vmem:[#allocation2 + $0xb8] sm:$0xff]
    %v307 = vld [vmem:[#allocation2 + $0xc0] sm:$0xff]
    %v308 = vld [vmem:[#allocation2 + $0xc8] sm:$0xff]
    %v309 = vld [vmem:[#allocation2 + $0xd0] sm:$0xff]
    %v310 = vld [vmem:[#allocation2 + $0xd8] sm:$0xff]
    %v311 = vld [vmem:[#allocation2 + $0xe0] sm:$0xff]
    %v312 = vld [vmem:[#allocation2 + $0xe8] sm:$0xff]
    %v313 = vld [vmem:[#allocation2 + $0xf0] sm:$0xff]
    %v314 = vld [vmem:[#allocation2 + $0xf8] sm:$0xff]
    %v315 = vld [vmem:[%s5] sm:$0x3]
    %v316 = vld [vmem:[%s6] sm:$0x3]
    %v317 = vpack.c.bf16 %v277, %v277
    %v318 = vpack.c.bf16 %v278, %v278
    %v351 = vunpack.c.l.b16 %v283
    %v352 = vunpack.c.h.b16 %v283
    %v353 = vunpack.c.l.b16 %v284
    %v354 = vunpack.c.h.b16 %v284
    %v355 = vunpack.c.l.b16 %v285
    %v356 = vunpack.c.h.b16 %v285
    %v357 = vunpack.c.l.b16 %v286
    %v358 = vunpack.c.h.b16 %v286
    %v359 = vunpack.c.l.b16 %v287
    %v360 = vunpack.c.h.b16 %v287
    %v361 = vunpack.c.l.b16 %v288
    %v362 = vunpack.c.h.b16 %v288
    %v363 = vunpack.c.l.b16 %v289
    %v364 = vunpack.c.h.b16 %v289
    %v365 = vunpack.c.l.b16 %v290
    %v366 = vunpack.c.h.b16 %v290
    %v367 = vunpack.c.l.b16 %v291
    %v368 = vunpack.c.h.b16 %v291
    %v369 = vunpack.c.l.b16 %v292
    %v370 = vunpack.c.h.b16 %v292
    %v371 = vunpack.c.l.b16 %v293
    %v372 = vunpack.c.h.b16 %v293
    %v373 = vunpack.c.l.b16 %v294
    %v374 = vunpack.c.h.b16 %v294
    %v375 = vunpack.c.l.b16 %v295
    %v376 = vunpack.c.h.b16 %v295
    %v377 = vunpack.c.l.b16 %v296
    %v378 = vunpack.c.h.b16 %v296
    %v379 = vunpack.c.l.b16 %v297
    %v380 = vunpack.c.h.b16 %v297
    %v381 = vunpack.c.l.b16 %v298
    %v382 = vunpack.c.h.b16 %v298
    %v383 = vunpack.c.l.b16 %v299
    %v384 = vunpack.c.h.b16 %v299
    %v385 = vunpack.c.l.b16 %v300
    %v386 = vunpack.c.h.b16 %v300
    %v387 = vunpack.c.l.b16 %v301
    %v388 = vunpack.c.h.b16 %v301
    %v389 = vunpack.c.l.b16 %v302
    %v390 = vunpack.c.h.b16 %v302
    %v391 = vunpack.c.l.b16 %v303
    %v392 = vunpack.c.h.b16 %v303
    %v393 = vunpack.c.l.b16 %v304
    %v394 = vunpack.c.h.b16 %v304
    %v395 = vunpack.c.l.b16 %v305
    %v396 = vunpack.c.h.b16 %v305
    %v397 = vunpack.c.l.b16 %v306
    %v398 = vunpack.c.h.b16 %v306
    %v399 = vunpack.c.l.b16 %v307
    %v400 = vunpack.c.h.b16 %v307
    %v401 = vunpack.c.l.b16 %v308
    %v402 = vunpack.c.h.b16 %v308
    %v403 = vunpack.c.l.b16 %v309
    %v404 = vunpack.c.h.b16 %v309
    %v405 = vunpack.c.l.b16 %v310
    %v406 = vunpack.c.h.b16 %v310
    %v407 = vunpack.c.l.b16 %v311
    %v408 = vunpack.c.h.b16 %v311
    %v409 = vunpack.c.l.b16 %v312
    %v410 = vunpack.c.h.b16 %v312
    %v411 = vunpack.c.l.b16 %v313
    %v412 = vunpack.c.h.b16 %v313
    %v413 = vunpack.c.l.b16 %v314
    %v414 = vunpack.c.h.b16 %v314
    %v415 = vpack.c.b16 %v353, %v351
    %v416 = vpack.c.b16 %v354, %v352
    %v417 = vpack.c.b16 %v357, %v355
    %v418 = vpack.c.b16 %v358, %v356
    %v419 = vpack.c.b16 %v361, %v359
    %v420 = vpack.c.b16 %v362, %v360
    %v421 = vpack.c.b16 %v365, %v363
    %v422 = vpack.c.b16 %v366, %v364
    %v423 = vpack.c.b16 %v369, %v367
    %v424 = vpack.c.b16 %v370, %v368
    %v425 = vpack.c.b16 %v373, %v371
    %v426 = vpack.c.b16 %v374, %v372
    %v427 = vpack.c.b16 %v377, %v375
    %v428 = vpack.c.b16 %v378, %v376
    %v429 = vpack.c.b16 %v381, %v379
    %v430 = vpack.c.b16 %v382, %v380
    %v431 = vpack.c.b16 %v385, %v383
    %v432 = vpack.c.b16 %v386, %v384
    %v433 = vpack.c.b16 %v389, %v387
    %v434 = vpack.c.b16 %v390, %v388
    %v435 = vpack.c.b16 %v393, %v391
    %v436 = vpack.c.b16 %v394, %v392
    %v437 = vpack.c.b16 %v397, %v395
    %v438 = vpack.c.b16 %v398, %v396
    %v439 = vpack.c.b16 %v401, %v399
    %v440 = vpack.c.b16 %v402, %v400
    %v441 = vpack.c.b16 %v405, %v403
    %v442 = vpack.c.b16 %v406, %v404
    %v443 = vpack.c.b16 %v409, %v407
    %v444 = vpack.c.b16 %v410, %v408
    %v445 = vpack.c.b16 %v413, %v411
    %v446 = vpack.c.b16 %v414, %v412
    %479 = vmatprep.subr.bf16.mxu0 %v430
    %480 = vmatpush1.bf16.msra.mxu0 %v429
    %481 = vmatprep.subr.bf16.mxu0 %v428
    %482 = vmatpush1.bf16.msra.mxu0 %v427
    %483 = vmatprep.subr.bf16.mxu0 %v426
    %484 = vmatpush1.bf16.msra.mxu0 %v425
    %485 = vmatprep.subr.bf16.mxu0 %v424
    %486 = vmatpush1.bf16.msra.mxu0 %v423
    %487 = vmatprep.subr.bf16.mxu0 %v422
    %488 = vmatpush1.bf16.msra.mxu0 %v421
    %489 = vmatprep.subr.bf16.mxu0 %v420
    %490 = vmatpush1.bf16.msra.mxu0 %v419
    %491 = vmatprep.subr.bf16.mxu0 %v418
    %492 = vmatpush1.bf16.msra.mxu0 %v417
    %493 = vmatprep.subr.bf16.mxu0 %v416
    %494 = vmatpush1.bf16.msra.mxu0 %v415
    %495 = vmatprep.subr.bf16.mxu0 %v446
    %496 = vmatpush2.bf16.msra.mxu0 %v445
    %497 = vmatprep.subr.bf16.mxu0 %v444
    %498 = vmatpush2.bf16.msra.mxu0 %v443
    %499 = vmatprep.subr.bf16.mxu0 %v442
    %500 = vmatpush2.bf16.msra.mxu0 %v441
    %501 = vmatprep.subr.bf16.mxu0 %v440
    %502 = vmatpush2.bf16.msra.mxu0 %v439
    %503 = vmatprep.subr.bf16.mxu0 %v438
    %504 = vmatpush2.bf16.msra.mxu0 %v437
    %505 = vmatprep.subr.bf16.mxu0 %v436
    %506 = vmatpush2.bf16.msra.mxu0 %v435
    %507 = vmatprep.subr.bf16.mxu0 %v434
    %508 = vmatpush2.bf16.msra.mxu0 %v433
    %509 = vmatprep.subr.bf16.mxu0 %v432
    %510 = vmatpush2.bf16.msra.mxu0 %v431
    %511 = vmatprep.mubr.bf16.mxu0 %v318
    %512 = vmatmul.mubr.bf16.gmra.mxu0 %v317
    %v513 = vpop.f32.mrf.mxu0
    %v514 = vadd.f32 0.0, %v513
    %v515 = vpop.f32.mrf.mxu0
    %v516 = vadd.f32 0.0, %v515
    %v517 = vpop.f32.mrf.mxu0
    %v518 = vpop.f32.mrf.mxu0
    %519 = vdwg.mxu0
    %v520 = vrot.slane %v514, 4
    %v521 = vadd.f32 %v514, %v520
    %v522 = vrot.slane %v521, 2
    %v523 = vadd.f32 %v521, %v522
    %v524 = vrot.slane %v523, 1
    %v525 = vadd.f32 %v523, %v524
    %v526 = vrot.slane %v516, 4
    %v527 = vadd.f32 %v516, %v526
    %v528 = vrot.slane %v527, 2
    %v529 = vadd.f32 %v527, %v528
    %v530 = vrot.slane %v529, 1
    %v531 = vadd.f32 %v529, %v530
    %v532 = vmul.f32 %v525, 0.125
    %v533 = vmul.f32 %v531, 0.125
    %v534 = vmul.f32 %v514, %v514
    %v535 = vmul.f32 %v516, %v516
    %v536 = vrot.slane %v534, 4
    %v537 = vadd.f32 %v534, %v536
    %v538 = vrot.slane %v537, 2
    %v539 = vadd.f32 %v537, %v538
    %v540 = vrot.slane %v539, 1
    %v541 = vadd.f32 %v539, %v540
    %v542 = vrot.slane %v535, 4
    %v543 = vadd.f32 %v535, %v542
    %v544 = vrot.slane %v543, 2
    %v545 = vadd.f32 %v543, %v544
    %v546 = vrot.slane %v545, 1
    %v547 = vadd.f32 %v545, %v546
    %v548 = vmul.f32 %v541, 0.125
    %v549 = vmul.f32 %v547, 0.125
    %v550 = vmul.f32 %v532, %v532
    %v551 = vmul.f32 %v533, %v533
    %v552 = vsub.f32 %v548, %v550
    %v553 = vsub.f32 %v549, %v551
    %v554 = vmax.f32 %v552, 0.0
    %v555 = vmax.f32 %v553, 0.0
    %v556 = vadd.f32 %v554, 1e-05
    %v557 = vadd.f32 %v555, 1e-05
    %v558 = vrsqrt.pop %v556
    %v559 = vrsqrt.pop %v557
    %v562 = vcombine.low %v558, %v559
    %v564 = vunpack.c.l.s4 1966171168
    %v565 = vunpack.c.0.s8 %v564
    %v566 = vlaneseq
    %v567 = vshrl.u32 %v566, 7
    %v568 = vsub.s32 %v565, %v567
    %v569 = vrot.slane %v562, %v568
    %v571 = vunpack.c.l.s4 1966171168
    %v572 = vunpack.c.0.s8 %v571
    %v573 = vlaneseq
    %v574 = vshrl.u32 %v573, 7
    %v575 = vsub.s32 %v572, %v574
    %v576 = vrot.slane %v569, %v575
    %v578 = vmul.f32 %v315, %v576
    %v580 = vlaneseq
    %v581 = vshrl.u32 %v580, 7
    %v582 = vsub.s32 0, %v581
    %v583 = vrot.slane %v578, %v582
    %v584 = vlaneseq
    %v585 = vshrl.u32 %v584, 7
    %v586 = vsub.s32 1, %v585
    %v587 = vrot.slane %v578, %v586
    %v590 = vmul.f32 %v532, %v583
    %v591 = vmul.f32 %v533, %v587
    %v594 = vcombine.low %v590, %v591
    %v596 = vunpack.c.l.s4 1966171168
    %v597 = vunpack.c.0.s8 %v596
    %v598 = vlaneseq
    %v599 = vshrl.u32 %v598, 7
    %v600 = vsub.s32 %v597, %v599
    %v601 = vrot.slane %v594, %v600
    %v603 = vunpack.c.l.s4 1966171168
    %v604 = vunpack.c.0.s8 %v603
    %v605 = vlaneseq
    %v606 = vshrl.u32 %v605, 7
    %v607 = vsub.s32 %v604, %v606
    %v608 = vrot.slane %v601, %v607
    %v610 = vsub.f32 %v316, %v608
    %v611 = vmul.f32 %v514, %v583
    %v612 = vmul.f32 %v516, %v587
    %v614 = vlaneseq
    %v615 = vshrl.u32 %v614, 7
    %v616 = vsub.s32 0, %v615
    %v617 = vrot.slane %v610, %v616
    %v618 = vlaneseq
    %v619 = vshrl.u32 %v618, 7
    %v620 = vsub.s32 1, %v619
    %v621 = vrot.slane %v610, %v620
    %v624 = vadd.f32 %v611, %v617
    %v625 = vadd.f32 %v612, %v621
    %v626 = vmax.f32 %v624, 0.0
    %v627 = vmax.f32 %v625, 0.0
    %s628 = sshll.u32 %s280, 4
    %629 = dma.done %s74, %s628
    %v630 = vld [vmem:[#allocation3] sm:$0xff]
    %v631 = vld [vmem:[#allocation3 + $0x8] sm:$0xff]
    %v632 = vld [vmem:[#allocation3 + $0x10] sm:$0xff]
    %v633 = vld [vmem:[#allocation3 + $0x18] sm:$0xff]
    %v634 = vld [vmem:[#allocation3 + $0x20] sm:$0xff]
    %v635 = vld [vmem:[#allocation3 + $0x28] sm:$0xff]
    %v636 = vld [vmem:[#allocation3 + $0x30] sm:$0xff]
    %v637 = vld [vmem:[#allocation3 + $0x38] sm:$0xff]
    %v638 = vld [vmem:[#allocation3 + $0x40] sm:$0xff]
    %v639 = vld [vmem:[#allocation3 + $0x48] sm:$0xff]
    %v640 = vld [vmem:[#allocation3 + $0x50] sm:$0xff]
    %v641 = vld [vmem:[#allocation3 + $0x58] sm:$0xff]
    %v642 = vld [vmem:[#allocation3 + $0x60] sm:$0xff]
    %v643 = vld [vmem:[#allocation3 + $0x68] sm:$0xff]
    %v644 = vld [vmem:[#allocation3 + $0x70] sm:$0xff]
    %v645 = vld [vmem:[#allocation3 + $0x78] sm:$0xff]
    %v646 = vld [vmem:[#allocation3 + $0x80] sm:$0xff]
    %v647 = vld [vmem:[#allocation3 + $0x88] sm:$0xff]
    %v648 = vld [vmem:[#allocation3 + $0x90] sm:$0xff]
    %v649 = vld [vmem:[#allocation3 + $0x98] sm:$0xff]
    %v650 = vld [vmem:[#allocation3 + $0xa0] sm:$0xff]
    %v651 = vld [vmem:[#allocation3 + $0xa8] sm:$0xff]
    %v652 = vld [vmem:[#allocation3 + $0xb0] sm:$0xff]
    %v653 = vld [vmem:[#allocation3 + $0xb8] sm:$0xff]
    %v654 = vld [vmem:[#allocation3 + $0xc0] sm:$0xff]
    %v655 = vld [vmem:[#allocation3 + $0xc8] sm:$0xff]
    %v656 = vld [vmem:[#allocation3 + $0xd0] sm:$0xff]
    %v657 = vld [vmem:[#allocation3 + $0xd8] sm:$0xff]
    %v658 = vld [vmem:[#allocation3 + $0xe0] sm:$0xff]
    %v659 = vld [vmem:[#allocation3 + $0xe8] sm:$0xff]
    %v660 = vld [vmem:[#allocation3 + $0xf0] sm:$0xff]
    %v661 = vld [vmem:[#allocation3 + $0xf8] sm:$0xff]
    %v662 = vld [vmem:[%s8] sm:$0x3]
    %v663 = vld [vmem:[%s9] sm:$0x3]
    %v664 = vpack.c.bf16 %v626, %v626
    %v665 = vpack.c.bf16 %v627, %v627
    %v698 = vunpack.c.l.b16 %v630
    %v699 = vunpack.c.h.b16 %v630
    %v700 = vunpack.c.l.b16 %v631
    %v701 = vunpack.c.h.b16 %v631
    %v702 = vunpack.c.l.b16 %v632
    %v703 = vunpack.c.h.b16 %v632
    %v704 = vunpack.c.l.b16 %v633
    %v705 = vunpack.c.h.b16 %v633
    %v706 = vunpack.c.l.b16 %v634
    %v707 = vunpack.c.h.b16 %v634
    %v708 = vunpack.c.l.b16 %v635
    %v709 = vunpack.c.h.b16 %v635
    %v710 = vunpack.c.l.b16 %v636
    %v711 = vunpack.c.h.b16 %v636
    %v712 = vunpack.c.l.b16 %v637
    %v713 = vunpack.c.h.b16 %v637
    %v714 = vunpack.c.l.b16 %v638
    %v715 = vunpack.c.h.b16 %v638
    %v716 = vunpack.c.l.b16 %v639
    %v717 = vunpack.c.h.b16 %v639
    %v718 = vunpack.c.l.b16 %v640
    %v719 = vunpack.c.h.b16 %v640
    %v720 = vunpack.c.l.b16 %v641
    %v721 = vunpack.c.h.b16 %v641
    %v722 = vunpack.c.l.b16 %v642
    %v723 = vunpack.c.h.b16 %v642
    %v724 = vunpack.c.l.b16 %v643
    %v725 = vunpack.c.h.b16 %v643
    %v726 = vunpack.c.l.b16 %v644
    %v727 = vunpack.c.h.b16 %v644
    %v728 = vunpack.c.l.b16 %v645
    %v729 = vunpack.c.h.b16 %v645
    %v730 = vunpack.c.l.b16 %v646
    %v731 = vunpack.c.h.b16 %v646
    %v732 = vunpack.c.l.b16 %v647
    %v733 = vunpack.c.h.b16 %v647
    %v734 = vunpack.c.l.b16 %v648
    %v735 = vunpack.c.h.b16 %v648
    %v736 = vunpack.c.l.b16 %v649
    %v737 = vunpack.c.h.b16 %v649
    %v738 = vunpack.c.l.b16 %v650
    %v739 = vunpack.c.h.b16 %v650
    %v740 = vunpack.c.l.b16 %v651
    %v741 = vunpack.c.h.b16 %v651
    %v742 = vunpack.c.l.b16 %v652
    %v743 = vunpack.c.h.b16 %v652
    %v744 = vunpack.c.l.b16 %v653
    %v745 = vunpack.c.h.b16 %v653
    %v746 = vunpack.c.l.b16 %v654
    %v747 = vunpack.c.h.b16 %v654
    %v748 = vunpack.c.l.b16 %v655
    %v749 = vunpack.c.h.b16 %v655
    %v750 = vunpack.c.l.b16 %v656
    %v751 = vunpack.c.h.b16 %v656
    %v752 = vunpack.c.l.b16 %v657
    %v753 = vunpack.c.h.b16 %v657
    %v754 = vunpack.c.l.b16 %v658
    %v755 = vunpack.c.h.b16 %v658
    %v756 = vunpack.c.l.b16 %v659
    %v757 = vunpack.c.h.b16 %v659
    %v758 = vunpack.c.l.b16 %v660
    %v759 = vunpack.c.h.b16 %v660
    %v760 = vunpack.c.l.b16 %v661
    %v761 = vunpack.c.h.b16 %v661
    %v762 = vpack.c.b16 %v700, %v698
    %v763 = vpack.c.b16 %v701, %v699
    %v764 = vpack.c.b16 %v704, %v702
    %v765 = vpack.c.b16 %v705, %v703
    %v766 = vpack.c.b16 %v708, %v706
    %v767 = vpack.c.b16 %v709, %v707
    %v768 = vpack.c.b16 %v712, %v710
    %v769 = vpack.c.b16 %v713, %v711
    %v770 = vpack.c.b16 %v716, %v714
    %v771 = vpack.c.b16 %v717, %v715
    %v772 = vpack.c.b16 %v720, %v718
    %v773 = vpack.c.b16 %v721, %v719
    %v774 = vpack.c.b16 %v724, %v722
    %v775 = vpack.c.b16 %v725, %v723
    %v776 = vpack.c.b16 %v728, %v726
    %v777 = vpack.c.b16 %v729, %v727
    %v778 = vpack.c.b16 %v732, %v730
    %v779 = vpack.c.b16 %v733, %v731
    %v780 = vpack.c.b16 %v736, %v734
    %v781 = vpack.c.b16 %v737, %v735
    %v782 = vpack.c.b16 %v740, %v738
    %v783 = vpack.c.b16 %v741, %v739
    %v784 = vpack.c.b16 %v744, %v742
    %v785 = vpack.c.b16 %v745, %v743
    %v786 = vpack.c.b16 %v748, %v746
    %v787 = vpack.c.b16 %v749, %v747
    %v788 = vpack.c.b16 %v752, %v750
    %v789 = vpack.c.b16 %v753, %v751
    %v790 = vpack.c.b16 %v756, %v754
    %v791 = vpack.c.b16 %v757, %v755
    %v792 = vpack.c.b16 %v760, %v758
    %v793 = vpack.c.b16 %v761, %v759
    %826 = vmatprep.subr.bf16.mxu0 %v777
    %827 = vmatpush1.bf16.msra.mxu0 %v776
    %828 = vmatprep.subr.bf16.mxu0 %v775
    %829 = vmatpush1.bf16.msra.mxu0 %v774
    %830 = vmatprep.subr.bf16.mxu0 %v773
    %831 = vmatpush1.bf16.msra.mxu0 %v772
    %832 = vmatprep.subr.bf16.mxu0 %v771
    %833 = vmatpush1.bf16.msra.mxu0 %v770
    %834 = vmatprep.subr.bf16.mxu0 %v769
    %835 = vmatpush1.bf16.msra.mxu0 %v768
    %836 = vmatprep.subr.bf16.mxu0 %v767
    %837 = vmatpush1.bf16.msra.mxu0 %v766
    %838 = vmatprep.subr.bf16.mxu0 %v765
    %839 = vmatpush1.bf16.msra.mxu0 %v764
    %840 = vmatprep.subr.bf16.mxu0 %v763
    %841 = vmatpush1.bf16.msra.mxu0 %v762
    %842 = vmatprep.subr.bf16.mxu0 %v793
    %843 = vmatpush2.bf16.msra.mxu0 %v792
    %844 = vmatprep.subr.bf16.mxu0 %v791
    %845 = vmatpush2.bf16.msra.mxu0 %v790
    %846 = vmatprep.subr.bf16.mxu0 %v789
    %847 = vmatpush2.bf16.msra.mxu0 %v788
    %848 = vmatprep.subr.bf16.mxu0 %v787
    %849 = vmatpush2.bf16.msra.mxu0 %v786
    %850 = vmatprep.subr.bf16.mxu0 %v785
    %851 = vmatpush2.bf16.msra.mxu0 %v784
    %852 = vmatprep.subr.bf16.mxu0 %v783
    %853 = vmatpush2.bf16.msra.mxu0 %v782
    %854 = vmatprep.subr.bf16.mxu0 %v781
    %855 = vmatpush2.bf16.msra.mxu0 %v780
    %856 = vmatprep.subr.bf16.mxu0 %v779
    %857 = vmatpush2.bf16.msra.mxu0 %v778
    %858 = vmatprep.mubr.bf16.mxu0 %v665
    %859 = vmatmul.mubr.bf16.gmra.mxu0 %v664
    %v860 = vpop.f32.mrf.mxu0
    %v861 = vadd.f32 0.0, %v860
    %v862 = vpop.f32.mrf.mxu0
    %v863 = vadd.f32 0.0, %v862
    %v864 = vpop.f32.mrf.mxu0
    %v865 = vpop.f32.mrf.mxu0
    %866 = vdwg.mxu0
    %v867 = vrot.slane %v861, 4
    %v868 = vadd.f32 %v861, %v867
    %v869 = vrot.slane %v868, 2
    %v870 = vadd.f32 %v868, %v869
    %v871 = vrot.slane %v870, 1
    %v872 = vadd.f32 %v870, %v871
    %v873 = vrot.slane %v863, 4
    %v874 = vadd.f32 %v863, %v873
    %v875 = vrot.slane %v874, 2
    %v876 = vadd.f32 %v874, %v875
    %v877 = vrot.slane %v876, 1
    %v878 = vadd.f32 %v876, %v877
    %v879 = vmul.f32 %v872, 0.125
    %v880 = vmul.f32 %v878, 0.125
    %v881 = vmul.f32 %v861, %v861
    %v882 = vmul.f32 %v863, %v863
    %v883 = vrot.slane %v881, 4
    %v884 = vadd.f32 %v881, %v883
    %v885 = vrot.slane %v884, 2
    %v886 = vadd.f32 %v884, %v885
    %v887 = vrot.slane %v886, 1
    %v888 = vadd.f32 %v886, %v887
    %v889 = vrot.slane %v882, 4
    %v890 = vadd.f32 %v882, %v889
    %v891 = vrot.slane %v890, 2
    %v892 = vadd.f32 %v890, %v891
    %v893 = vrot.slane %v892, 1
    %v894 = vadd.f32 %v892, %v893
    %v895 = vmul.f32 %v888, 0.125
    %v896 = vmul.f32 %v894, 0.125
    %v897 = vmul.f32 %v879, %v879
    %v898 = vmul.f32 %v880, %v880
    %v899 = vsub.f32 %v895, %v897
    %v900 = vsub.f32 %v896, %v898
    %v901 = vmax.f32 %v899, 0.0
    %v902 = vmax.f32 %v900, 0.0
    %v903 = vadd.f32 %v901, 1e-05
    %v904 = vadd.f32 %v902, 1e-05
    %v905 = vrsqrt.pop %v903
    %v906 = vrsqrt.pop %v904
    %v909 = vcombine.low %v905, %v906
    %v911 = vunpack.c.l.s4 1966171168
    %v912 = vunpack.c.0.s8 %v911
    %v913 = vlaneseq
    %v914 = vshrl.u32 %v913, 7
    %v915 = vsub.s32 %v912, %v914
    %v916 = vrot.slane %v909, %v915
    %v918 = vunpack.c.l.s4 1966171168
    %v919 = vunpack.c.0.s8 %v918
    %v920 = vlaneseq
    %v921 = vshrl.u32 %v920, 7
    %v922 = vsub.s32 %v919, %v921
    %v923 = vrot.slane %v916, %v922
    %v925 = vmul.f32 %v662, %v923
    %v927 = vlaneseq
    %v928 = vshrl.u32 %v927, 7
    %v929 = vsub.s32 0, %v928
    %v930 = vrot.slane %v925, %v929
    %v931 = vlaneseq
    %v932 = vshrl.u32 %v931, 7
    %v933 = vsub.s32 1, %v932
    %v934 = vrot.slane %v925, %v933
    %v937 = vmul.f32 %v879, %v930
    %v938 = vmul.f32 %v880, %v934
    %v941 = vcombine.low %v937, %v938
    %v943 = vunpack.c.l.s4 1966171168
    %v944 = vunpack.c.0.s8 %v943
    %v945 = vlaneseq
    %v946 = vshrl.u32 %v945, 7
    %v947 = vsub.s32 %v944, %v946
    %v948 = vrot.slane %v941, %v947
    %v950 = vunpack.c.l.s4 1966171168
    %v951 = vunpack.c.0.s8 %v950
    %v952 = vlaneseq
    %v953 = vshrl.u32 %v952, 7
    %v954 = vsub.s32 %v951, %v953
    %v955 = vrot.slane %v948, %v954
    %v957 = vsub.f32 %v663, %v955
    %v958 = vmul.f32 %v861, %v930
    %v959 = vmul.f32 %v863, %v934
    %v961 = vlaneseq
    %v962 = vshrl.u32 %v961, 7
    %v963 = vsub.s32 0, %v962
    %v964 = vrot.slane %v957, %v963
    %v965 = vlaneseq
    %v966 = vshrl.u32 %v965, 7
    %v967 = vsub.s32 1, %v966
    %v968 = vrot.slane %v957, %v967
    %v971 = vadd.f32 %v958, %v964
    %v972 = vadd.f32 %v959, %v968
    %v973 = vmax.f32 %v971, 0.0
    %v974 = vmax.f32 %v972, 0.0
    %s975 = smul.u32 %s279, 1
    %s976 = sshll.u32 %s975, 4
    %977 = dma.done %s86, %s976
    %v978 = vld [vmem:[#allocation4] sm:$0xf]
    %v979 = vld [vmem:[#allocation4 + $0x4] sm:$0xf]
    %v980 = vld [vmem:[#allocation4 + $0x8] sm:$0xf]
    %v981 = vld [vmem:[#allocation4 + $0xc] sm:$0xf]
    %v982 = vld [vmem:[#allocation4 + $0x10] sm:$0xf]
    %v983 = vld [vmem:[#allocation4 + $0x14] sm:$0xf]
    %v984 = vld [vmem:[#allocation4 + $0x18] sm:$0xf]
    %v985 = vld [vmem:[#allocation4 + $0x1c] sm:$0xf]
    %v986 = vld [vmem:[#allocation4 + $0x20] sm:$0xf]
    %v987 = vld [vmem:[#allocation4 + $0x24] sm:$0xf]
    %v988 = vld [vmem:[#allocation4 + $0x28] sm:$0xf]
    %v989 = vld [vmem:[#allocation4 + $0x2c] sm:$0xf]
    %v990 = vld [vmem:[#allocation4 + $0x30] sm:$0xf]
    %v991 = vld [vmem:[#allocation4 + $0x34] sm:$0xf]
    %v992 = vld [vmem:[#allocation4 + $0x38] sm:$0xf]
    %v993 = vld [vmem:[#allocation4 + $0x3c] sm:$0xf]
    %v994 = vld [vmem:[#allocation4 + $0x40] sm:$0xf]
    %v995 = vld [vmem:[#allocation4 + $0x44] sm:$0xf]
    %v996 = vld [vmem:[#allocation4 + $0x48] sm:$0xf]
    %v997 = vld [vmem:[#allocation4 + $0x4c] sm:$0xf]
    %v998 = vld [vmem:[#allocation4 + $0x50] sm:$0xf]
    %v999 = vld [vmem:[#allocation4 + $0x54] sm:$0xf]
    %v1000 = vld [vmem:[#allocation4 + $0x58] sm:$0xf]
    %v1001 = vld [vmem:[#allocation4 + $0x5c] sm:$0xf]
    %v1002 = vld [vmem:[#allocation4 + $0x60] sm:$0xf]
    %v1003 = vld [vmem:[#allocation4 + $0x64] sm:$0xf]
    %v1004 = vld [vmem:[#allocation4 + $0x68] sm:$0xf]
    %v1005 = vld [vmem:[#allocation4 + $0x6c] sm:$0xf]
    %v1006 = vld [vmem:[#allocation4 + $0x70] sm:$0xf]
    %v1007 = vld [vmem:[#allocation4 + $0x74] sm:$0xf]
    %v1008 = vld [vmem:[#allocation4 + $0x78] sm:$0xf]
    %v1009 = vld [vmem:[#allocation4 + $0x7c] sm:$0xf]
    %v1010 = vpack.c.bf16 %v973, %v973
    %v1011 = vpack.c.bf16 %v974, %v974
    %v1012 = vld [vmem:[%s11] sm:$0x1]
    %v1014 = vlaneseq
    %v1015 = vshrl.u32 %v1014, 7
    %v1016 = vsub.s32 0, %v1015
    %v1017 = vrot.slane %v1012, %v1016
    %v1051 = vunpack.c.l.b16 %v978
    %v1052 = vunpack.c.l.b16 %v979
    %v1053 = vunpack.c.l.b16 %v980
    %v1054 = vunpack.c.l.b16 %v981
    %v1055 = vunpack.c.l.b16 %v982
    %v1056 = vunpack.c.l.b16 %v983
    %v1057 = vunpack.c.l.b16 %v984
    %v1058 = vunpack.c.l.b16 %v985
    %v1059 = vunpack.c.l.b16 %v986
    %v1060 = vunpack.c.l.b16 %v987
    %v1061 = vunpack.c.l.b16 %v988
    %v1062 = vunpack.c.l.b16 %v989
    %v1063 = vunpack.c.l.b16 %v990
    %v1064 = vunpack.c.l.b16 %v991
    %v1065 = vunpack.c.l.b16 %v992
    %v1066 = vunpack.c.l.b16 %v993
    %v1067 = vunpack.c.l.b16 %v994
    %v1068 = vunpack.c.l.b16 %v995
    %v1069 = vunpack.c.l.b16 %v996
    %v1070 = vunpack.c.l.b16 %v997
    %v1071 = vunpack.c.l.b16 %v998
    %v1072 = vunpack.c.l.b16 %v999
    %v1073 = vunpack.c.l.b16 %v1000
    %v1074 = vunpack.c.l.b16 %v1001
    %v1075 = vunpack.c.l.b16 %v1002
    %v1076 = vunpack.c.l.b16 %v1003
    %v1077 = vunpack.c.l.b16 %v1004
    %v1078 = vunpack.c.l.b16 %v1005
    %v1079 = vunpack.c.l.b16 %v1006
    %v1080 = vunpack.c.l.b16 %v1007
    %v1081 = vunpack.c.l.b16 %v1008
    %v1082 = vunpack.c.l.b16 %v1009
    %v1083 = vpack.c.b16 %v1052, %v1051
    %v1084 = vpack.c.b16 %v1054, %v1053
    %v1085 = vpack.c.b16 %v1056, %v1055
    %v1086 = vpack.c.b16 %v1058, %v1057
    %v1087 = vpack.c.b16 %v1060, %v1059
    %v1088 = vpack.c.b16 %v1062, %v1061
    %v1089 = vpack.c.b16 %v1064, %v1063
    %v1090 = vpack.c.b16 %v1066, %v1065
    %v1091 = vpack.c.b16 %v1068, %v1067
    %v1092 = vpack.c.b16 %v1070, %v1069
    %v1093 = vpack.c.b16 %v1072, %v1071
    %v1094 = vpack.c.b16 %v1074, %v1073
    %v1095 = vpack.c.b16 %v1076, %v1075
    %v1096 = vpack.c.b16 %v1078, %v1077
    %v1097 = vpack.c.b16 %v1080, %v1079
    %v1098 = vpack.c.b16 %v1082, %v1081
    %1115 = vmatprep.subr.bf16.mxu0 0
    %1116 = vmatpush1.bf16.msra.mxu0 %v1090
    %1117 = vmatprep.subr.bf16.mxu0 0
    %1118 = vmatpush1.bf16.msra.mxu0 %v1089
    %1119 = vmatprep.subr.bf16.mxu0 0
    %1120 = vmatpush1.bf16.msra.mxu0 %v1088
    %1121 = vmatprep.subr.bf16.mxu0 0
    %1122 = vmatpush1.bf16.msra.mxu0 %v1087
    %1123 = vmatprep.subr.bf16.mxu0 0
    %1124 = vmatpush1.bf16.msra.mxu0 %v1086
    %1125 = vmatprep.subr.bf16.mxu0 0
    %1126 = vmatpush1.bf16.msra.mxu0 %v1085
    %1127 = vmatprep.subr.bf16.mxu0 0
    %1128 = vmatpush1.bf16.msra.mxu0 %v1084
    %1129 = vmatprep.subr.bf16.mxu0 0
    %1130 = vmatpush1.bf16.msra.mxu0 %v1083
    %1131 = vmatprep.subr.bf16.mxu0 0
    %1132 = vmatpush2.bf16.msra.mxu0 %v1098
    %1133 = vmatprep.subr.bf16.mxu0 0
    %1134 = vmatpush2.bf16.msra.mxu0 %v1097
    %1135 = vmatprep.subr.bf16.mxu0 0
    %1136 = vmatpush2.bf16.msra.mxu0 %v1096
    %1137 = vmatprep.subr.bf16.mxu0 0
    %1138 = vmatpush2.bf16.msra.mxu0 %v1095
    %1139 = vmatprep.subr.bf16.mxu0 0
    %1140 = vmatpush2.bf16.msra.mxu0 %v1094
    %1141 = vmatprep.subr.bf16.mxu0 0
    %1142 = vmatpush2.bf16.msra.mxu0 %v1093
    %1143 = vmatprep.subr.bf16.mxu0 0
    %1144 = vmatpush2.bf16.msra.mxu0 %v1092
    %1145 = vmatprep.subr.bf16.mxu0 0
    %1146 = vmatpush2.bf16.msra.mxu0 %v1091
    %1147 = vmatprep.mubr.bf16.mxu0 %v1011
    %1148 = vmatmul.mubr.bf16.gmra.mxu0 %v1010
    %v1149 = vpop.f32.mrf.mxu0
    %v1150 = vadd.f32 %v1017, %v1149
    %v1151 = vpop.f32.mrf.mxu0
    %v1152 = vpop.f32.mrf.mxu0
    %v1153 = vpop.f32.mrf.mxu0
    %1154 = vdwg.mxu0
    %1155 = vst [vmem:[#allocation11] sm:$0xff] %v1150
    // Predicated region
    $region58: #{obj_model_forward.1} parent=1 // pred_check
      _
    $region59: #{obj_model_forward.1} parent=1 // pred_check_branch
      %1157 = sbr.rel (0) target = $region61
    $region60: #{obj_model_forward.1} parent=1 // pred_region
      %s1159 = ssub.s32 128, 128
      %1160 = vsyncadd [#allocation8], %s1159
      %s1162 = sshll.u32 [#allocation11], 4
      %s1163 = int_to_ptr.vmem [resolvable:$true] %s1162
      %1165 = dma.vmem_to_hbm [thread:$0]  %s1163, 128, %s12, [#allocation8]
    $region61: #{obj_model_forward.1} parent=1 // pred_fallthru
      _
    // Predicated region
    $region62: #{obj_model_forward.1} parent=1 // pred_check
      _
    $region63: #{obj_model_forward.1} parent=1 // pred_check_branch
      %1167 = sbr.rel (0) target = $region65
    $region64: #{obj_model_forward.1} parent=1 // pred_region
      %1168 = dma.done [#allocation8], 128
    $region65: #{obj_model_forward.1} parent=1 // pred_fallthru
      _
    %1169 = vsyncpa [#allocation7], 1
    %1170 = vsyncpa [#allocation10], 1
    %1171 = vsyncpa [#allocation8], 1
  %1172 = vsyncmov [#allocation5]
  %s1173 = vpop.sfrf %1172
  %p1174 = scmp.eq.s32.totalorder %s1173, 0
  %p1175 = pneg %p1174
  %1177 = shalt.err (%p1175)
  %s1178 = scalar_lea.sflag [#allocation5], 1
  %1179 = vsyncmov %s1178
  %s1180 = vpop.sfrf %1179
  %p1181 = scmp.eq.s32.totalorder %s1180, 0
  %p1182 = pneg %p1181
  %1184 = shalt.err (%p1182)
  %s1185 = scalar_lea.sflag [#allocation5], 2
  %1186 = vsyncmov %s1185
  %s1187 = vpop.sfrf %1186
  %p1188 = scmp.eq.s32.totalorder %s1187, 0
  %p1189 = pneg %p1188
  %1191 = shalt.err (%p1189)

</llo_original>
